<compile_context>
chip_gen: v7x
topology: tpu7x:2x2x1
jax: 0.10.0
libtpu: 0.0.40
codegen_flags: <defaults>
</compile_context>

<pallas_src>
import jax
import jax.numpy as jnp
from jax.experimental import pallas as pl
from jax.experimental.pallas import tpu as pltpu

# Module hyper-parameters (from Wall_GF.__init__ defaults)
M = 0.0001
S = 10.0
NEG_S = -S  # fold the leading negate into the scale

# Tiling constants
_LANE_COL_CANDIDATES = (1024, 512, 256, 128)   # largest divisor wins
_TARGET_BLOCK_BYTES = 2 * 1024 * 1024          # ~2 MiB per block (v5e-safe)
_SMALL_INPUT_ELEMS = 65536                     # below this, pure-XLA is faster


def _wall_gf_kernel(x_ref, o_ref):
    x = x_ref[...]
    shifted = x - jnp.asarray(M, x.dtype)
    clamped = jnp.clip(shifted, jnp.asarray(0.0, x.dtype), jnp.asarray(1.0, x.dtype))
    o_ref[...] = clamped * jnp.asarray(NEG_S, x.dtype)


def _wall_gf_jnp(x: jax.Array) -> jax.Array:
    """Fused-XLA fallback (same math / same dtype handling as the kernel)."""
    dt = x.dtype
    return jnp.clip(
        x - jnp.asarray(M, dt), jnp.asarray(0.0, dt), jnp.asarray(1.0, dt)
    ) * jnp.asarray(NEG_S, dt)


def wall_gf(x: jax.Array) -> jax.Array:
    """Applies Wall_GF elementwise. Accepts any shape; returns same shape/dtype."""
    orig_shape = x.shape
    dtype = x.dtype
    total = x.size

    # Tiny-input fast path: pallas_call launch overhead dominates below ~64K.
    if total == 0 or total <= _SMALL_INPUT_ELEMS:
        return _wall_gf_jnp(x)

    # Pick the widest lane count that allows a zero-copy (rows, cols) reshape.
    lane_cols = next((c for c in _LANE_COL_CANDIDATES if total % c == 0), None)
    if lane_cols is None:
        # No zero-copy lane-dense reshape exists; any pad/stitch path would add
        # >= 2x HBM traffic on a bandwidth-bound op, so the fused XLA
        # elementwise (already at roofline) is strictly better here.
        return _wall_gf_jnp(x)

    itemsize = jnp.dtype(dtype).itemsize
    rows = total // lane_cols
    x2d = x.reshape(rows, lane_cols)  # zero-copy

    # Sublane packing multiple: 8 for 32-bit, 16 for 16-bit, 32 for 8-bit.
    sublane = 8 * max(1, 4 // itemsize)

    # Dtype-aware block rows: keep each block at ~2 MiB.
    target_rows = max(
        sublane, (_TARGET_BLOCK_BYTES // (lane_cols * itemsize)) // sublane * sublane
    )

    if rows < 2 * sublane:
        # Too short to split on a sublane boundary: one full-extent block
        # (block_shape == full array dim satisfies the (8,128) rule).
        block_rows = rows
    else:
        # Guarantee >= 2 grid steps so v7x can shard the parallel axis across
        # both TensorCores (free on single-TC v5e/v6e).
        half = pl.cdiv(pl.cdiv(rows, 2), sublane) * sublane
        block_rows = min(target_rows, half)

    grid = (pl.cdiv(rows, block_rows),)

    out2d = pl.pallas_call(
        _wall_gf_kernel,
        out_shape=jax.ShapeDtypeStruct((rows, lane_cols), dtype),
        grid=grid,
        in_specs=[pl.BlockSpec((block_rows, lane_cols), lambda i: (i, 0))],
        out_specs=pl.BlockSpec((block_rows, lane_cols), lambda i: (i, 0)),
        compiler_params=pltpu.CompilerParams(
            dimension_semantics=("parallel",),
        ),
        # Note: if the caller can donate x, adding input_output_aliases={0: 0}
        # (plus jit donation) removes the extra output allocation.
    )(x2d)

    return out2d.reshape(orig_shape)


if __name__ == "__main__":
    key = jax.random.PRNGKey(0)
    k1, k2, k3, k4 = jax.random.split(key, 4)

    def ref(x):
        dt = x.dtype
        return jnp.clip(
            x - jnp.asarray(M, dt), jnp.asarray(0.0, dt), jnp.asarray(1.0, dt)
        ) * jnp.asarray(NEG_S, dt)

    # 1) Small NCHW demo shape (tiny-input fast path).
    x_small = jax.random.uniform(
        k1, (2, 4, 16, 16), dtype=jnp.float32, minval=-0.5, maxval=1.5
    )
    y_small = wall_gf(x_small)
    jax.block_until_ready(y_small)
    assert y_small.shape == x_small.shape and y_small.dtype == x_small.dtype
    assert jnp.allclose(y_small, ref(x_small), atol=1e-6)

    # 2) Larger f32 input that exercises the Pallas path (131072 elems,
    #    divisible by 1024 -> zero-copy reshape, grid >= 2 steps).
    x_big = jax.random.uniform(
        k2, (2, 8, 64, 128), dtype=jnp.float32, minval=-0.5, maxval=1.5
    )
    y_big = wall_gf(x_big)
    jax.block_until_ready(y_big)
    assert y_big.shape == x_big.shape and y_big.dtype == x_big.dtype
    assert jnp.allclose(y_big, ref(x_big), atol=1e-6)

    # 3) bf16 input through the Pallas path (dtype-aware tiling: 16-row sublane
    #    multiple, ~2 MiB blocks).
    x_bf16 = jax.random.uniform(
        k3, (2, 8, 64, 128), dtype=jnp.float32, minval=-0.5, maxval=1.5
    ).astype(jnp.bfloat16)
    y_bf16 = wall_gf(x_bf16)
    jax.block_until_ready(y_bf16)
    assert y_bf16.shape == x_bf16.shape and y_bf16.dtype == jnp.bfloat16
    assert jnp.allclose(
        y_bf16.astype(jnp.float32), ref(x_bf16).astype(jnp.float32), atol=1e-2
    )

    # 4) Awkward size (> 64K, not divisible by 128) -> fused-XLA fallback path.
    x_odd = jax.random.uniform(
        k4, (257, 513), dtype=jnp.float32, minval=-0.5, maxval=1.5
    )
    y_odd = wall_gf(x_odd)
    jax.block_until_ready(y_odd)
    assert y_odd.shape == x_odd.shape
    assert jnp.allclose(y_odd, ref(x_odd), atol=1e-6)

    print("KERNEL_OK")
</pallas_src>

<mosaic_0001>
module attributes {stable_mosaic.version = 11 : i64} {
  func.func @_wall_gf_kernel(%arg0: i32, %arg1: memref<64x1024xf32, #tpu.memory_space<vmem>>, %arg2: memref<64x1024xf32, #tpu.memory_space<vmem>>) attributes {dimension_semantics = [#tpu.dimension_semantics<parallel>], iteration_bounds = array<i64: 2>, scalar_prefetch = 0 : i64, scratch_operands = 0 : i64, tpu.core_type = #tpu.core_type<tc>, window_params = [{transform_indices = @transform_0, window_bounds = array<i64: 64, 1024>}, {transform_indices = @transform_1, window_bounds = array<i64: 64, 1024>}]} {
    %c0 = arith.constant 0 : index
    %c0_0 = arith.constant 0 : index
    %0 = vector.load %arg1[%c0, %c0_0] : memref<64x1024xf32, #tpu.memory_space<vmem>>, vector<64x1024xf32>
    %cst = arith.constant 9.99999974E-5 : f32
    %1 = vector.broadcast %cst : f32 to vector<64x1024xf32>
    %2 = arith.subf %0, %1 : vector<64x1024xf32>
    %cst_1 = arith.constant 0.000000e+00 : f32
    %cst_2 = arith.constant 1.000000e+00 : f32
    %3 = vector.broadcast %cst_1 : f32 to vector<64x1024xf32>
    %4 = arith.maximumf %3, %2 : vector<64x1024xf32>
    %5 = vector.broadcast %cst_2 : f32 to vector<64x1024xf32>
    %6 = arith.minimumf %5, %4 : vector<64x1024xf32>
    %cst_3 = arith.constant -1.000000e+01 : f32
    %7 = vector.broadcast %cst_3 : f32 to vector<64x1024xf32>
    %8 = arith.mulf %6, %7 : vector<64x1024xf32>
    %c0_4 = arith.constant 0 : index
    %c0_5 = arith.constant 0 : index
    %9 = vector.load %arg2[%c0_4, %c0_5] : memref<64x1024xf32, #tpu.memory_space<vmem>>, vector<64x1024xf32>
    tpu.vector_store %arg2[%c0_4, %c0_5], %8 {strides = array<i32>} : memref<64x1024xf32, #tpu.memory_space<vmem>>, vector<64x1024xf32>,
    return
  }
  func.func @transform_0(%arg0: i32) -> (i32, i32) {
    %c0_i32 = arith.constant 0 : i32
    %c0_i32_0 = arith.constant 0 : i32
    return %arg0, %c0_i32 : i32, i32
  }
  func.func @transform_1(%arg0: i32) -> (i32, i32) {
    %c0_i32 = arith.constant 0 : i32
    %c0_i32_0 = arith.constant 0 : i32
    return %arg0, %c0_i32 : i32, i32
  }
}

</mosaic_0001>

<llo_original>
// kernel: tpu_custom_call.1
$region0: #{tpu_custom_call.1}
  #allocation0 [shape = 'u32[]', space=smem, size = 0x4, offset = 0x4, fixed_abs, tag = 'smem constant byte address 0x4 - core index']
  #allocation1 [shape = 'u32[144,128]{1,0:T(1,128)}', space=vmem, size = 0x12000, scoped, tag = 'internal scratch']
  %s0 = inlined_call_operand.hbm [shape: f32[128,1024], index: 0, kind: input, shape index: {}]
  %s1 = inlined_call_operand.hbm [shape: f32[128,1024], index: 1, kind: output, shape index: {}]
  %s2 = sld [smem:[#allocation0]]
  $region41: #{tpu_custom_call.1} parent=0
    _
  %s4 = ssub.s32 1, %s2
  %s5 = scalar_select 0, %s4, %s2
  $region1: #{tpu_custom_call.1} parent=0
    #allocation2 [shape = 'u8[524288]{0}', space=vmem, size = 0x80000, scoped, tag = 'input window, operand 0']
    #allocation3 [shape = 's32[2]{0}', space=sflag, size = 0x8, scoped, tag = 'scoped memory for tpu_custom_call.1']
    #allocation4 [shape = 's32[2]{0}', space=sflag, size = 0x8, scoped, tag = 'scoped memory for tpu_custom_call.1']
    #allocation5 [shape = 'u8[524288]{0}', space=vmem, size = 0x80000, scoped, tag = 'output window, operand 0']
    %6 = vsyncpa [#allocation3], 0
    %s7 = scalar_lea.sflag [#allocation3], 1
    %8 = vsyncpa %s7, 0
    %9 = vsyncpa [#allocation4], 0
    %s10 = scalar_lea.sflag [#allocation4], 1
    %11 = vsyncpa %s10, 0
    loop: start=0, step=1, limit=4
    $region2: #{tpu_custom_call.1} parent=1 // loop_pre_header
      _
    $region3: #{tpu_custom_call.1} parent=1 // loop_header
      %s13 = sphi 0, %s17
      %p14 = scmp.ge.s32.totalorder %s13, 4
      %s23 = sphi 0, %s25
      %s26 = sphi 0, %s23
      %s27 = sphi 0, %s26
      %s43 = sphi 0, %s27
      %s49 = sphi 0, %s51
      %s52 = sphi 0, %s49
      %s53 = sphi 0, %s52
      %s69 = sphi 0, %s53
    $region4: #{tpu_custom_call.1} parent=1 // loop_header_branch
      %16 = sbr.rel (%p14) target = $region8
    $region5: #{tpu_custom_call.1} parent=1 // loop_body
      %s18 = ssub.s32 %s13, 1
      %s19 = ssub.s32 %s13, 2
      %s20 = sadd.s32 %s13, 1
      %s21 = ssub.s32 %s13, %s20
      %p22 = scmp.eq.s32.totalorder %s21, 0
      %s24 = sadd.s32 %s23, 1
      %s25 = scalar_select %p22, %s23, %s24
      %p28 = pneg %p22
      %p29 = scmp.eq.s32.totalorder %s13, 1
      %p30 = por %p28, %p29
      %p31 = scmp.ne.s32.totalorder %s23, %s26
      %p32 = scmp.eq.s32.totalorder %s13, 0
      %p33 = por %p31, %p32
      %p34 = scmp.ne.s32.totalorder %s23, %s26
      %p35 = scmp.eq.s32.totalorder %s18, 1
      %p36 = por %p34, %p35
      %p37 = scmp.ne.s32.totalorder %s26, %s27
      %p38 = scmp.eq.s32.totalorder %s18, 0
      %p39 = por %p37, %p38
      %p40 = scmp.ne.s32.totalorder %s26, %s27
      %p41 = scmp.eq.s32.totalorder %s19, 1
      %p42 = por %p40, %p41
      %p44 = scmp.ne.s32.totalorder %s27, %s43
      %p45 = scmp.eq.s32.totalorder %s19, 0
      %p46 = por %p44, %p45
      %s47 = ssub.s32 %s13, %s20
      %p48 = scmp.eq.s32.totalorder %s47, 0
      %s50 = sadd.s32 %s49, 1
      %s51 = scalar_select %p48, %s49, %s50
      %p54 = pneg %p48
      %p55 = scmp.eq.s32.totalorder %s13, 1
      %p56 = por %p54, %p55
      %p57 = scmp.ne.s32.totalorder %s49, %s52
      %p58 = scmp.eq.s32.totalorder %s13, 0
      %p59 = por %p57, %p58
      %p60 = scmp.ne.s32.totalorder %s49, %s52
      %p61 = scmp.eq.s32.totalorder %s18, 1
      %p62 = por %p60, %p61
      %p63 = scmp.ne.s32.totalorder %s52, %s53
      %p64 = scmp.eq.s32.totalorder %s18, 0
      %p65 = por %p63, %p64
      %p66 = scmp.ne.s32.totalorder %s52, %s53
      %p67 = scmp.eq.s32.totalorder %s19, 1
      %p68 = por %p66, %p67
      %p70 = scmp.ne.s32.totalorder %s53, %s69
      %p71 = scmp.eq.s32.totalorder %s19, 0
      %p72 = por %p70, %p71
      %p73 = scmp.le.s32.totalorder 1, %s13
      %p74 = scmp.lt.s32.totalorder %s13, 3
      %p75 = pnand %p73, %p74
      %p76 = pneg %p75
      // Predicated region
      $region9: #{tpu_custom_call.1} parent=5 // pred_check
        _
      $region10: #{tpu_custom_call.1} parent=5 // pred_check_branch
        %78 = sbr.rel (%p75) target = $region12
      $region11: #{tpu_custom_call.1} parent=5 // pred_region
        %s79 = ssub.s32 %s13, 1
      $region12: #{tpu_custom_call.1} parent=5 // pred_fallthru
        _
      %p80 = scmp.lt.s32.totalorder %s13, 2
      // Predicated region
      $region13: #{tpu_custom_call.1} parent=5 // pred_check
        %p81 = pneg %p80
      $region14: #{tpu_custom_call.1} parent=5 // pred_check_branch
        %83 = sbr.rel (%p81) target = $region16
      $region15: #{tpu_custom_call.1} parent=5 // pred_region
        // Predicated region
        $region17: #{tpu_custom_call.1} parent=15 // pred_check
          %p84 = pneg %p33
        $region18: #{tpu_custom_call.1} parent=15 // pred_check_branch
          %86 = sbr.rel (%p84) target = $region20
        $region19: #{tpu_custom_call.1} parent=15 // pred_region
          %s87 = sand.u32 %s23, 1
          %s88 = scalar_lea.sflag [#allocation3], %s87
          %s89 = sand.u32 %s23, 1
          %s90 = smul.addr %s89, 512
          %s91 = scalar_lea.vmem [#allocation2], %s90
          %s92 = smul.u32 8, %s13
          %s94 = ssub.s32 8192, 8192
          %95 = vsyncadd %s88, %s94
          %s96 = smul.addr %s92, 8
          %s97 = smul.addr %s96, 128
          %s98 = scalar_lea.hbm %s0, %s97
          %s99 = sshll.u32 %s91, 4
          %s100 = int_to_ptr.vmem [resolvable:$true] %s99
          %105 = dma.hbm_to_vmem [thread:$0]  %s98, 8192, %s100, %s88, 1024, 1024, 64
        $region20: #{tpu_custom_call.1} parent=15 // pred_fallthru
          _
      $region16: #{tpu_custom_call.1} parent=5 // pred_fallthru
        _
      %p106 = scmp.le.s32.totalorder 1, %s13
      %p107 = scmp.lt.s32.totalorder %s13, 3
      %p108 = pnand %p106, %p107
      %p109 = pneg %p108
      // Predicated region
      $region21: #{tpu_custom_call.1} parent=5 // pred_check
        _
      $region22: #{tpu_custom_call.1} parent=5 // pred_check_branch
        %111 = sbr.rel (%p108) target = $region24
      $region23: #{tpu_custom_call.1} parent=5 // pred_region
        %s112 = ssub.s32 %s13, 1
        %s113 = sand.u32 %s26, 1
        %s114 = scalar_lea.sflag [#allocation3], %s113
        %s115 = sand.u32 %s26, 1
        %s116 = smul.addr %s115, 512
        %s117 = scalar_lea.vmem [#allocation2], %s116
        // Predicated region
        $region25: #{tpu_custom_call.1} parent=23 // pred_check
          %p118 = pneg %p39
        $region26: #{tpu_custom_call.1} parent=23 // pred_check_branch
          %120 = sbr.rel (%p118) target = $region28
        $region27: #{tpu_custom_call.1} parent=23 // pred_region
          %121 = dma.done %s114, 8192
        $region28: #{tpu_custom_call.1} parent=23 // pred_fallthru
          _
        %s122 = sand.u32 %s26, 1
        %s123 = scalar_lea.sflag [#allocation3], %s122
        %s124 = sand.u32 %s26, 1
        %s125 = smul.addr %s124, 512
        %s126 = scalar_lea.vmem [#allocation2], %s125
        %p127 = pneg %p39
        %p128 = pneg %p36
        %p129 = pneg %p65
        %p130 = pneg %p62
        %s131 = sand.u32 %s52, 1
        %s132 = scalar_lea.sflag [#allocation4], %s131
        %s133 = sand.u32 %s52, 1
        %s134 = smul.addr %s133, 512
        %s135 = scalar_lea.vmem [#allocation5], %s134
        %s136 = smul.u32 8, %s18
        %s137 = smul.u32 8, %s18
        %v138 = vld [vmem:[%s117] sm:$0xff]
        %v139 = vld [vmem:[%s117 + $0x8] sm:$0xff]
        %v140 = vld [vmem:[%s117 + $0x10] sm:$0xff]
        %v141 = vld [vmem:[%s117 + $0x18] sm:$0xff]
        %v142 = vld [vmem:[%s117 + $0x20] sm:$0xff]
        %v143 = vld [vmem:[%s117 + $0x28] sm:$0xff]
        %v144 = vld [vmem:[%s117 + $0x30] sm:$0xff]
        %v145 = vld [vmem:[%s117 + $0x38] sm:$0xff]
        %v146 = vld [vmem:[%s117 + $0x40] sm:$0xff]
        %v147 = vld [vmem:[%s117 + $0x48] sm:$0xff]
        %v148 = vld [vmem:[%s117 + $0x50] sm:$0xff]
        %v149 = vld [vmem:[%s117 + $0x58] sm:$0xff]
        %v150 = vld [vmem:[%s117 + $0x60] sm:$0xff]
        %v151 = vld [vmem:[%s117 + $0x68] sm:$0xff]
        %v152 = vld [vmem:[%s117 + $0x70] sm:$0xff]
        %v153 = vld [vmem:[%s117 + $0x78] sm:$0xff]
        %v154 = vld [vmem:[%s117 + $0x80] sm:$0xff]
        %v155 = vld [vmem:[%s117 + $0x88] sm:$0xff]
        %v156 = vld [vmem:[%s117 + $0x90] sm:$0xff]
        %v157 = vld [vmem:[%s117 + $0x98] sm:$0xff]
        %v158 = vld [vmem:[%s117 + $0xa0] sm:$0xff]
        %v159 = vld [vmem:[%s117 + $0xa8] sm:$0xff]
        %v160 = vld [vmem:[%s117 + $0xb0] sm:$0xff]
        %v161 = vld [vmem:[%s117 + $0xb8] sm:$0xff]
        %v162 = vld [vmem:[%s117 + $0xc0] sm:$0xff]
        %v163 = vld [vmem:[%s117 + $0xc8] sm:$0xff]
        %v164 = vld [vmem:[%s117 + $0xd0] sm:$0xff]
        %v165 = vld [vmem:[%s117 + $0xd8] sm:$0xff]
        %v166 = vld [vmem:[%s117 + $0xe0] sm:$0xff]
        %v167 = vld [vmem:[%s117 + $0xe8] sm:$0xff]
        %v168 = vld [vmem:[%s117 + $0xf0] sm:$0xff]
        %v169 = vld [vmem:[%s117 + $0xf8] sm:$0xff]
        %v170 = vld [vmem:[%s117 + $0x100] sm:$0xff]
        %v171 = vld [vmem:[%s117 + $0x108] sm:$0xff]
        %v172 = vld [vmem:[%s117 + $0x110] sm:$0xff]
        %v173 = vld [vmem:[%s117 + $0x118] sm:$0xff]
        %v174 = vld [vmem:[%s117 + $0x120] sm:$0xff]
        %v175 = vld [vmem:[%s117 + $0x128] sm:$0xff]
        %v176 = vld [vmem:[%s117 + $0x130] sm:$0xff]
        %v177 = vld [vmem:[%s117 + $0x138] sm:$0xff]
        %v178 = vld [vmem:[%s117 + $0x140] sm:$0xff]
        %v179 = vld [vmem:[%s117 + $0x148] sm:$0xff]
        %v180 = vld [vmem:[%s117 + $0x150] sm:$0xff]
        %v181 = vld [vmem:[%s117 + $0x158] sm:$0xff]
        %v182 = vld [vmem:[%s117 + $0x160] sm:$0xff]
        %v183 = vld [vmem:[%s117 + $0x168] sm:$0xff]
        %v184 = vld [vmem:[%s117 + $0x170] sm:$0xff]
        %v185 = vld [vmem:[%s117 + $0x178] sm:$0xff]
        %v186 = vld [vmem:[%s117 + $0x180] sm:$0xff]
        %v187 = vld [vmem:[%s117 + $0x188] sm:$0xff]
        %v188 = vld [vmem:[%s117 + $0x190] sm:$0xff]
        %v189 = vld [vmem:[%s117 + $0x198] sm:$0xff]
        %v190 = vld [vmem:[%s117 + $0x1a0] sm:$0xff]
        %v191 = vld [vmem:[%s117 + $0x1a8] sm:$0xff]
        %v192 = vld [vmem:[%s117 + $0x1b0] sm:$0xff]
        %v193 = vld [vmem:[%s117 + $0x1b8] sm:$0xff]
        %v194 = vld [vmem:[%s117 + $0x1c0] sm:$0xff]
        %v195 = vld [vmem:[%s117 + $0x1c8] sm:$0xff]
        %v196 = vld [vmem:[%s117 + $0x1d0] sm:$0xff]
        %v197 = vld [vmem:[%s117 + $0x1d8] sm:$0xff]
        %v198 = vld [vmem:[%s117 + $0x1e0] sm:$0xff]
        %v199 = vld [vmem:[%s117 + $0x1e8] sm:$0xff]
        %v200 = vld [vmem:[%s117 + $0x1f0] sm:$0xff]
        %v201 = vld [vmem:[%s117 + $0x1f8] sm:$0xff]
        %v202 = vsub.f32 %v138, 0.0001
        %v203 = vsub.f32 %v139, 0.0001
        %v204 = vsub.f32 %v140, 0.0001
        %v205 = vsub.f32 %v141, 0.0001
        %v206 = vsub.f32 %v142, 0.0001
        %v207 = vsub.f32 %v143, 0.0001
        %v208 = vsub.f32 %v144, 0.0001
        %v209 = vsub.f32 %v145, 0.0001
        %v210 = vsub.f32 %v146, 0.0001
        %v211 = vsub.f32 %v147, 0.0001
        %v212 = vsub.f32 %v148, 0.0001
        %v213 = vsub.f32 %v149, 0.0001
        %v214 = vsub.f32 %v150, 0.0001
        %v215 = vsub.f32 %v151, 0.0001
        %v216 = vsub.f32 %v152, 0.0001
        %v217 = vsub.f32 %v153, 0.0001
        %v218 = vsub.f32 %v154, 0.0001
        %v219 = vsub.f32 %v155, 0.0001
        %v220 = vsub.f32 %v156, 0.0001
        %v221 = vsub.f32 %v157, 0.0001
        %v222 = vsub.f32 %v158, 0.0001
        %v223 = vsub.f32 %v159, 0.0001
        %v224 = vsub.f32 %v160, 0.0001
        %v225 = vsub.f32 %v161, 0.0001
        %v226 = vsub.f32 %v162, 0.0001
        %v227 = vsub.f32 %v163, 0.0001
        %v228 = vsub.f32 %v164, 0.0001
        %v229 = vsub.f32 %v165, 0.0001
        %v230 = vsub.f32 %v166, 0.0001
        %v231 = vsub.f32 %v167, 0.0001
        %v232 = vsub.f32 %v168, 0.0001
        %v233 = vsub.f32 %v169, 0.0001
        %v234 = vsub.f32 %v170, 0.0001
        %v235 = vsub.f32 %v171, 0.0001
        %v236 = vsub.f32 %v172, 0.0001
        %v237 = vsub.f32 %v173, 0.0001
        %v238 = vsub.f32 %v174, 0.0001
        %v239 = vsub.f32 %v175, 0.0001
        %v240 = vsub.f32 %v176, 0.0001
        %v241 = vsub.f32 %v177, 0.0001
        %v242 = vsub.f32 %v178, 0.0001
        %v243 = vsub.f32 %v179, 0.0001
        %v244 = vsub.f32 %v180, 0.0001
        %v245 = vsub.f32 %v181, 0.0001
        %v246 = vsub.f32 %v182, 0.0001
        %v247 = vsub.f32 %v183, 0.0001
        %v248 = vsub.f32 %v184, 0.0001
        %v249 = vsub.f32 %v185, 0.0001
        %v250 = vsub.f32 %v186, 0.0001
        %v251 = vsub.f32 %v187, 0.0001
        %v252 = vsub.f32 %v188, 0.0001
        %v253 = vsub.f32 %v189, 0.0001
        %v254 = vsub.f32 %v190, 0.0001
        %v255 = vsub.f32 %v191, 0.0001
        %v256 = vsub.f32 %v192, 0.0001
        %v257 = vsub.f32 %v193, 0.0001
        %v258 = vsub.f32 %v194, 0.0001
        %v259 = vsub.f32 %v195, 0.0001
        %v260 = vsub.f32 %v196, 0.0001
        %v261 = vsub.f32 %v197, 0.0001
        %v262 = vsub.f32 %v198, 0.0001
        %v263 = vsub.f32 %v199, 0.0001
        %v264 = vsub.f32 %v200, 0.0001
        %v265 = vsub.f32 %v201, 0.0001
        %v266 = vmax.f32 %v202, 0.0
        %v267 = vmax.f32 %v203, 0.0
        %v268 = vmax.f32 %v204, 0.0
        %v269 = vmax.f32 %v205, 0.0
        %v270 = vmax.f32 %v206, 0.0
        %v271 = vmax.f32 %v207, 0.0
        %v272 = vmax.f32 %v208, 0.0
        %v273 = vmax.f32 %v209, 0.0
        %v274 = vmax.f32 %v210, 0.0
        %v275 = vmax.f32 %v211, 0.0
        %v276 = vmax.f32 %v212, 0.0
        %v277 = vmax.f32 %v213, 0.0
        %v278 = vmax.f32 %v214, 0.0
        %v279 = vmax.f32 %v215, 0.0
        %v280 = vmax.f32 %v216, 0.0
        %v281 = vmax.f32 %v217, 0.0
        %v282 = vmax.f32 %v218, 0.0
        %v283 = vmax.f32 %v219, 0.0
        %v284 = vmax.f32 %v220, 0.0
        %v285 = vmax.f32 %v221, 0.0
        %v286 = vmax.f32 %v222, 0.0
        %v287 = vmax.f32 %v223, 0.0
        %v288 = vmax.f32 %v224, 0.0
        %v289 = vmax.f32 %v225, 0.0
        %v290 = vmax.f32 %v226, 0.0
        %v291 = vmax.f32 %v227, 0.0
        %v292 = vmax.f32 %v228, 0.0
        %v293 = vmax.f32 %v229, 0.0
        %v294 = vmax.f32 %v230, 0.0
        %v295 = vmax.f32 %v231, 0.0
        %v296 = vmax.f32 %v232, 0.0
        %v297 = vmax.f32 %v233, 0.0
        %v298 = vmax.f32 %v234, 0.0
        %v299 = vmax.f32 %v235, 0.0
        %v300 = vmax.f32 %v236, 0.0
        %v301 = vmax.f32 %v237, 0.0
        %v302 = vmax.f32 %v238, 0.0
        %v303 = vmax.f32 %v239, 0.0
        %v304 = vmax.f32 %v240, 0.0
        %v305 = vmax.f32 %v241, 0.0
        %v306 = vmax.f32 %v242, 0.0
        %v307 = vmax.f32 %v243, 0.0
        %v308 = vmax.f32 %v244, 0.0
        %v309 = vmax.f32 %v245, 0.0
        %v310 = vmax.f32 %v246, 0.0
        %v311 = vmax.f32 %v247, 0.0
        %v312 = vmax.f32 %v248, 0.0
        %v313 = vmax.f32 %v249, 0.0
        %v314 = vmax.f32 %v250, 0.0
        %v315 = vmax.f32 %v251, 0.0
        %v316 = vmax.f32 %v252, 0.0
        %v317 = vmax.f32 %v253, 0.0
        %v318 = vmax.f32 %v254, 0.0
        %v319 = vmax.f32 %v255, 0.0
        %v320 = vmax.f32 %v256, 0.0
        %v321 = vmax.f32 %v257, 0.0
        %v322 = vmax.f32 %v258, 0.0
        %v323 = vmax.f32 %v259, 0.0
        %v324 = vmax.f32 %v260, 0.0
        %v325 = vmax.f32 %v261, 0.0
        %v326 = vmax.f32 %v262, 0.0
        %v327 = vmax.f32 %v263, 0.0
        %v328 = vmax.f32 %v264, 0.0
        %v329 = vmax.f32 %v265, 0.0
        %v330 = vmin.f32 %v266, 1.0
        %v331 = vmin.f32 %v267, 1.0
        %v332 = vmin.f32 %v268, 1.0
        %v333 = vmin.f32 %v269, 1.0
        %v334 = vmin.f32 %v270, 1.0
        %v335 = vmin.f32 %v271, 1.0
        %v336 = vmin.f32 %v272, 1.0
        %v337 = vmin.f32 %v273, 1.0
        %v338 = vmin.f32 %v274, 1.0
        %v339 = vmin.f32 %v275, 1.0
        %v340 = vmin.f32 %v276, 1.0
        %v341 = vmin.f32 %v277, 1.0
        %v342 = vmin.f32 %v278, 1.0
        %v343 = vmin.f32 %v279, 1.0
        %v344 = vmin.f32 %v280, 1.0
        %v345 = vmin.f32 %v281, 1.0
        %v346 = vmin.f32 %v282, 1.0
        %v347 = vmin.f32 %v283, 1.0
        %v348 = vmin.f32 %v284, 1.0
        %v349 = vmin.f32 %v285, 1.0
        %v350 = vmin.f32 %v286, 1.0
        %v351 = vmin.f32 %v287, 1.0
        %v352 = vmin.f32 %v288, 1.0
        %v353 = vmin.f32 %v289, 1.0
        %v354 = vmin.f32 %v290, 1.0
        %v355 = vmin.f32 %v291, 1.0
        %v356 = vmin.f32 %v292, 1.0
        %v357 = vmin.f32 %v293, 1.0
        %v358 = vmin.f32 %v294, 1.0
        %v359 = vmin.f32 %v295, 1.0
        %v360 = vmin.f32 %v296, 1.0
        %v361 = vmin.f32 %v297, 1.0
        %v362 = vmin.f32 %v298, 1.0
        %v363 = vmin.f32 %v299, 1.0
        %v364 = vmin.f32 %v300, 1.0
        %v365 = vmin.f32 %v301, 1.0
        %v366 = vmin.f32 %v302, 1.0
        %v367 = vmin.f32 %v303, 1.0
        %v368 = vmin.f32 %v304, 1.0
        %v369 = vmin.f32 %v305, 1.0
        %v370 = vmin.f32 %v306, 1.0
        %v371 = vmin.f32 %v307, 1.0
        %v372 = vmin.f32 %v308, 1.0
        %v373 = vmin.f32 %v309, 1.0
        %v374 = vmin.f32 %v310, 1.0
        %v375 = vmin.f32 %v311, 1.0
        %v376 = vmin.f32 %v312, 1.0
        %v377 = vmin.f32 %v313, 1.0
        %v378 = vmin.f32 %v314, 1.0
        %v379 = vmin.f32 %v315, 1.0
        %v380 = vmin.f32 %v316, 1.0
        %v381 = vmin.f32 %v317, 1.0
        %v382 = vmin.f32 %v318, 1.0
        %v383 = vmin.f32 %v319, 1.0
        %v384 = vmin.f32 %v320, 1.0
        %v385 = vmin.f32 %v321, 1.0
        %v386 = vmin.f32 %v322, 1.0
        %v387 = vmin.f32 %v323, 1.0
        %v388 = vmin.f32 %v324, 1.0
        %v389 = vmin.f32 %v325, 1.0
        %v390 = vmin.f32 %v326, 1.0
        %v391 = vmin.f32 %v327, 1.0
        %v392 = vmin.f32 %v328, 1.0
        %v393 = vmin.f32 %v329, 1.0
        %v394 = vmul.f32 %v330, -10.0
        %v395 = vmul.f32 %v331, -10.0
        %v396 = vmul.f32 %v332, -10.0
        %v397 = vmul.f32 %v333, -10.0
        %v398 = vmul.f32 %v334, -10.0
        %v399 = vmul.f32 %v335, -10.0
        %v400 = vmul.f32 %v336, -10.0
        %v401 = vmul.f32 %v337, -10.0
        %v402 = vmul.f32 %v338, -10.0
        %v403 = vmul.f32 %v339, -10.0
        %v404 = vmul.f32 %v340, -10.0
        %v405 = vmul.f32 %v341, -10.0
        %v406 = vmul.f32 %v342, -10.0
        %v407 = vmul.f32 %v343, -10.0
        %v408 = vmul.f32 %v344, -10.0
        %v409 = vmul.f32 %v345, -10.0
        %v410 = vmul.f32 %v346, -10.0
        %v411 = vmul.f32 %v347, -10.0
        %v412 = vmul.f32 %v348, -10.0
        %v413 = vmul.f32 %v349, -10.0
        %v414 = vmul.f32 %v350, -10.0
        %v415 = vmul.f32 %v351, -10.0
        %v416 = vmul.f32 %v352, -10.0
        %v417 = vmul.f32 %v353, -10.0
        %v418 = vmul.f32 %v354, -10.0
        %v419 = vmul.f32 %v355, -10.0
        %v420 = vmul.f32 %v356, -10.0
        %v421 = vmul.f32 %v357, -10.0
        %v422 = vmul.f32 %v358, -10.0
        %v423 = vmul.f32 %v359, -10.0
        %v424 = vmul.f32 %v360, -10.0
        %v425 = vmul.f32 %v361, -10.0
        %v426 = vmul.f32 %v362, -10.0
        %v427 = vmul.f32 %v363, -10.0
        %v428 = vmul.f32 %v364, -10.0
        %v429 = vmul.f32 %v365, -10.0
        %v430 = vmul.f32 %v366, -10.0
        %v431 = vmul.f32 %v367, -10.0
        %v432 = vmul.f32 %v368, -10.0
        %v433 = vmul.f32 %v369, -10.0
        %v434 = vmul.f32 %v370, -10.0
        %v435 = vmul.f32 %v371, -10.0
        %v436 = vmul.f32 %v372, -10.0
        %v437 = vmul.f32 %v373, -10.0
        %v438 = vmul.f32 %v374, -10.0
        %v439 = vmul.f32 %v375, -10.0
        %v440 = vmul.f32 %v376, -10.0
        %v441 = vmul.f32 %v377, -10.0
        %v442 = vmul.f32 %v378, -10.0
        %v443 = vmul.f32 %v379, -10.0
        %v444 = vmul.f32 %v380, -10.0
        %v445 = vmul.f32 %v381, -10.0
        %v446 = vmul.f32 %v382, -10.0
        %v447 = vmul.f32 %v383, -10.0
        %v448 = vmul.f32 %v384, -10.0
        %v449 = vmul.f32 %v385, -10.0
        %v450 = vmul.f32 %v386, -10.0
        %v451 = vmul.f32 %v387, -10.0
        %v452 = vmul.f32 %v388, -10.0
        %v453 = vmul.f32 %v389, -10.0
        %v454 = vmul.f32 %v390, -10.0
        %v455 = vmul.f32 %v391, -10.0
        %v456 = vmul.f32 %v392, -10.0
        %v457 = vmul.f32 %v393, -10.0
        %458 = vst [vmem:[%s135] sm:$0xff] %v394
        %459 = vst [vmem:[%s135 + $0x8] sm:$0xff] %v395
        %460 = vst [vmem:[%s135 + $0x10] sm:$0xff] %v396
        %461 = vst [vmem:[%s135 + $0x18] sm:$0xff] %v397
        %462 = vst [vmem:[%s135 + $0x20] sm:$0xff] %v398
        %463 = vst [vmem:[%s135 + $0x28] sm:$0xff] %v399
        %464 = vst [vmem:[%s135 + $0x30] sm:$0xff] %v400
        %465 = vst [vmem:[%s135 + $0x38] sm:$0xff] %v401
        %466 = vst [vmem:[%s135 + $0x40] sm:$0xff] %v402
        %467 = vst [vmem:[%s135 + $0x48] sm:$0xff] %v403
        %468 = vst [vmem:[%s135 + $0x50] sm:$0xff] %v404
        %469 = vst [vmem:[%s135 + $0x58] sm:$0xff] %v405
        %470 = vst [vmem:[%s135 + $0x60] sm:$0xff] %v406
        %471 = vst [vmem:[%s135 + $0x68] sm:$0xff] %v407
        %472 = vst [vmem:[%s135 + $0x70] sm:$0xff] %v408
        %473 = vst [vmem:[%s135 + $0x78] sm:$0xff] %v409
        %474 = vst [vmem:[%s135 + $0x80] sm:$0xff] %v410
        %475 = vst [vmem:[%s135 + $0x88] sm:$0xff] %v411
        %476 = vst [vmem:[%s135 + $0x90] sm:$0xff] %v412
        %477 = vst [vmem:[%s135 + $0x98] sm:$0xff] %v413
        %478 = vst [vmem:[%s135 + $0xa0] sm:$0xff] %v414
        %479 = vst [vmem:[%s135 + $0xa8] sm:$0xff] %v415
        %480 = vst [vmem:[%s135 + $0xb0] sm:$0xff] %v416
        %481 = vst [vmem:[%s135 + $0xb8] sm:$0xff] %v417
        %482 = vst [vmem:[%s135 + $0xc0] sm:$0xff] %v418
        %483 = vst [vmem:[%s135 + $0xc8] sm:$0xff] %v419
        %484 = vst [vmem:[%s135 + $0xd0] sm:$0xff] %v420
        %485 = vst [vmem:[%s135 + $0xd8] sm:$0xff] %v421
        %486 = vst [vmem:[%s135 + $0xe0] sm:$0xff] %v422
        %487 = vst [vmem:[%s135 + $0xe8] sm:$0xff] %v423
        %488 = vst [vmem:[%s135 + $0xf0] sm:$0xff] %v424
        %489 = vst [vmem:[%s135 + $0xf8] sm:$0xff] %v425
        %490 = vst [vmem:[%s135 + $0x100] sm:$0xff] %v426
        %491 = vst [vmem:[%s135 + $0x108] sm:$0xff] %v427
        %492 = vst [vmem:[%s135 + $0x110] sm:$0xff] %v428
        %493 = vst [vmem:[%s135 + $0x118] sm:$0xff] %v429
        %494 = vst [vmem:[%s135 + $0x120] sm:$0xff] %v430
        %495 = vst [vmem:[%s135 + $0x128] sm:$0xff] %v431
        %496 = vst [vmem:[%s135 + $0x130] sm:$0xff] %v432
        %497 = vst [vmem:[%s135 + $0x138] sm:$0xff] %v433
        %498 = vst [vmem:[%s135 + $0x140] sm:$0xff] %v434
        %499 = vst [vmem:[%s135 + $0x148] sm:$0xff] %v435
        %500 = vst [vmem:[%s135 + $0x150] sm:$0xff] %v436
        %501 = vst [vmem:[%s135 + $0x158] sm:$0xff] %v437
        %502 = vst [vmem:[%s135 + $0x160] sm:$0xff] %v438
        %503 = vst [vmem:[%s135 + $0x168] sm:$0xff] %v439
        %504 = vst [vmem:[%s135 + $0x170] sm:$0xff] %v440
        %505 = vst [vmem:[%s135 + $0x178] sm:$0xff] %v441
        %506 = vst [vmem:[%s135 + $0x180] sm:$0xff] %v442
        %507 = vst [vmem:[%s135 + $0x188] sm:$0xff] %v443
        %508 = vst [vmem:[%s135 + $0x190] sm:$0xff] %v444
        %509 = vst [vmem:[%s135 + $0x198] sm:$0xff] %v445
        %510 = vst [vmem:[%s135 + $0x1a0] sm:$0xff] %v446
        %511 = vst [vmem:[%s135 + $0x1a8] sm:$0xff] %v447
        %512 = vst [vmem:[%s135 + $0x1b0] sm:$0xff] %v448
        %513 = vst [vmem:[%s135 + $0x1b8] sm:$0xff] %v449
        %514 = vst [vmem:[%s135 + $0x1c0] sm:$0xff] %v450
        %515 = vst [vmem:[%s135 + $0x1c8] sm:$0xff] %v451
        %516 = vst [vmem:[%s135 + $0x1d0] sm:$0xff] %v452
        %517 = vst [vmem:[%s135 + $0x1d8] sm:$0xff] %v453
        %518 = vst [vmem:[%s135 + $0x1e0] sm:$0xff] %v454
        %519 = vst [vmem:[%s135 + $0x1e8] sm:$0xff] %v455
        %520 = vst [vmem:[%s135 + $0x1f0] sm:$0xff] %v456
        %521 = vst [vmem:[%s135 + $0x1f8] sm:$0xff] %v457
        %s522 = sand.u32 %s52, 1
        %s523 = scalar_lea.sflag [#allocation4], %s522
        %s524 = sand.u32 %s52, 1
        %s525 = smul.addr %s524, 512
        %s526 = scalar_lea.vmem [#allocation5], %s525
        // Predicated region
        $region29: #{tpu_custom_call.1} parent=23 // pred_check
          %p527 = pneg %p62
        $region30: #{tpu_custom_call.1} parent=23 // pred_check_branch
          %529 = sbr.rel (%p527) target = $region32
        $region31: #{tpu_custom_call.1} parent=23 // pred_region
          %s530 = smul.u32 8, %s18
          %s532 = ssub.s32 8192, 8192
          %533 = vsyncadd %s523, %s532
          %s534 = smul.addr %s530, 8
          %s535 = smul.addr %s534, 128
          %s536 = scalar_lea.hbm %s1, %s535
          %s537 = sshll.u32 %s526, 4
          %s538 = int_to_ptr.vmem [resolvable:$true] %s537
          %543 = dma.vmem_to_hbm [thread:$0]  %s538, 8192, %s536, %s523, 1024, 1024, 64
        $region32: #{tpu_custom_call.1} parent=23 // pred_fallthru
          _
      $region24: #{tpu_custom_call.1} parent=5 // pred_fallthru
        _
      %p544 = scmp.le.s32.totalorder 2, %s13
      // Predicated region
      $region33: #{tpu_custom_call.1} parent=5 // pred_check
        %p545 = pneg %p544
      $region34: #{tpu_custom_call.1} parent=5 // pred_check_branch
        %547 = sbr.rel (%p545) target = $region36
      $region35: #{tpu_custom_call.1} parent=5 // pred_region
        %s548 = ssub.s32 %s13, 2
        // Predicated region
        $region37: #{tpu_custom_call.1} parent=35 // pred_check
          %p549 = pneg %p68
        $region38: #{tpu_custom_call.1} parent=35 // pred_check_branch
          %551 = sbr.rel (%p549) target = $region40
        $region39: #{tpu_custom_call.1} parent=35 // pred_region
          %s552 = sand.u32 %s53, 1
          %s553 = scalar_lea.sflag [#allocation4], %s552
          %s554 = sand.u32 %s53, 1
          %s555 = smul.addr %s554, 512
          %s556 = scalar_lea.vmem [#allocation5], %s555
          %557 = dma.done %s553, 8192
        $region40: #{tpu_custom_call.1} parent=35 // pred_fallthru
          _
      $region36: #{tpu_custom_call.1} parent=5 // pred_fallthru
        _
    $region6: #{tpu_custom_call.1} parent=1 // loop_footer
      %s17 = sadd.s32 1, %s13
    $region7: #{tpu_custom_call.1} parent=1 // loop_footer_branch
      %12 = sbr.rel target = $region3
    $region8: #{tpu_custom_call.1} parent=1 // loop_exit
      _
    %558 = vsyncpa [#allocation3], 1
    %s559 = scalar_lea.sflag [#allocation3], 1
    %560 = vsyncpa %s559, 1
    %561 = vsyncpa [#allocation4], 1
    %s562 = scalar_lea.sflag [#allocation4], 1
    %563 = vsyncpa %s562, 1

</llo_original>
